<compile_context>
chip_gen: v6e
topology: v6e:2x2x1
jax: 0.10.0
libtpu: 0.0.40
codegen_flags: <defaults>
</compile_context>

<pallas_src>
import functools
import numpy as np
import jax
import jax.numpy as jnp
from jax.experimental import pallas as pl
from jax.experimental.pallas import tpu as pltpu

EPS = float(np.finfo(np.float32).eps)  # torch.finfo(torch.float32).eps


def _ceil_to(x, m):
    return ((x + m - 1) // m) * m


def _tap_plan(stride):
    """Tap order (phase, ky, kx) used by BOTH the weight layout and the kernel (phase-grouped)."""
    if stride == 1:
        return [(0, ky, kx) for ky in range(3) for kx in range(3)]
    plan = []
    for p in range(4):
        for ky in range(3):
            for kx in range(3):
                if (ky % 2) * 2 + (kx % 2) == p:
                    plan.append((p, ky, kx))
    return plan


# ---------------------------------------------------------------------------
# Pallas kernels
# ---------------------------------------------------------------------------
def _norm_kernel(x_ref, o_ref):
    # x / sqrt(sum(x^2) + eps) per batch element (rsqrt -> EUP slot).
    x = x_ref[...]
    s = jnp.sum(x * x)
    o_ref[...] = x * jax.lax.rsqrt(s + EPS)


def _stft_kernel(dftt_ref, fr_ref, o_ref):
    # dftt: (2F, n_fft) with Hann window folded in; fr: (n_fft, TN) columns = (batch*chan, frame).
    o_ref[...] = jnp.dot(dftt_ref[...], fr_ref[...], preferred_element_type=jnp.float32)


def _conv_kernel(xc_ref, xh_ref, w_ref, b_ref, o_ref, *, offsets, lrelu):
    # xc_ref: (1, P, Cin_pad, TM) current lane-block; xh_ref: (1, P, Cin_pad, HALO) narrow halo.
    # w_ref: (Cout, 9*Cin_pad) bf16 (tap blocks in `offsets` order); b_ref: (Cout, 1) f32.
    # o_ref: (1, Cout, TM).
    TM = o_ref.shape[-1]
    pieces = []
    cur_p, xw = None, None
    for (p, d) in offsets:                                   # grouped by phase
        if p != cur_p:
            xw = jnp.concatenate([xc_ref[0, p], xh_ref[0, p]], axis=-1)  # (Cin_pad, TM+HALO)
            cur_p = p
        pieces.append(xw[:, d:d + TM])                       # static lane slice (no roll)
    xstack = jnp.concatenate(pieces, axis=0)                 # (9*Cin_pad, TM)
    acc = jnp.dot(w_ref[...], xstack, preferred_element_type=jnp.float32)  # one MXU dot
    acc = acc + b_ref[...]
    if lrelu:
        acc = jnp.where(acc > 0, acc, 0.2 * acc)
    o_ref[0] = acc.astype(o_ref.dtype)


# ---------------------------------------------------------------------------
# Wrappers
# ---------------------------------------------------------------------------
def normalize_est(est):
    B, nch, T = est.shape
    return pl.pallas_call(
        _norm_kernel,
        out_shape=jax.ShapeDtypeStruct(est.shape, jnp.float32),
        grid=(B,),
        in_specs=[pl.BlockSpec((1, nch, T), lambda b: (b, 0, 0))],
        out_specs=pl.BlockSpec((1, nch, T), lambda b: (b, 0, 0)),
        compiler_params=pltpu.CompilerParams(dimension_semantics=("parallel",)),
    )(est)


def stft_pallas(x, n_fft, hop):
    """x: (BN, T) -> (real, imag) each (BN, F, n_frames); matches torch.stft
    (center=True, reflect pad, periodic Hann window, onesided, not normalized)."""
    BN, T = x.shape
    pad = n_fft // 2
    # TODO(synk): reflect pad + frame gather stay as JAX glue feeding the Pallas DFT matmul.
    xp = jnp.pad(x, ((0, 0), (pad, pad)), mode="reflect")
    n_frames = 1 + T // hop
    idx = np.arange(n_fft)[:, None] + np.arange(n_frames)[None, :] * hop      # (n_fft, n_frames)
    # All BN columns folded into the matmul N dim: frames[n, b, t] = xp[b, idx[n, t]].
    frames = xp[jnp.arange(BN)[None, :, None], jnp.asarray(idx)[:, None, :]]  # (n_fft, BN, nfr)
    Ncols = BN * n_frames
    frames = frames.reshape(n_fft, Ncols)

    F = n_fft // 2 + 1
    n = np.arange(n_fft)
    k = np.arange(F)
    ang = 2.0 * np.pi * np.outer(k, n) / n_fft
    win = 0.5 * (1.0 - np.cos(2.0 * np.pi * n / n_fft))       # periodic hann
    dft_t = np.concatenate([np.cos(ang) * win[None, :],
                            -np.sin(ang) * win[None, :]], axis=0).astype(np.float32)  # (2F, n_fft)
    dft_t = jnp.asarray(dft_t)

    TN = min(512, _ceil_to(Ncols, 128))                       # lane-dense column tiles
    nN = -(-Ncols // TN)
    frames = jnp.pad(frames, ((0, 0), (0, nN * TN - Ncols)))

    out = pl.pallas_call(
        _stft_kernel,
        out_shape=jax.ShapeDtypeStruct((2 * F, nN * TN), jnp.float32),
        grid=(nN,),
        in_specs=[
            pl.BlockSpec((2 * F, n_fft), lambda j: (0, 0)),   # resident windowed-DFT matrix
            pl.BlockSpec((n_fft, TN), lambda j: (0, j)),
        ],
        out_specs=pl.BlockSpec((2 * F, TN), lambda j: (0, j)),
        compiler_params=pltpu.CompilerParams(dimension_semantics=("parallel",)),
    )(dft_t, frames)

    out = out[:, :Ncols].reshape(2, F, BN, n_frames)
    real = jnp.moveaxis(out[0], 1, 0)                         # (BN, F, n_frames)
    imag = jnp.moveaxis(out[1], 1, 0)
    return real, imag


def conv3x3_nchw(x, layer, lrelu, out_dtype=jnp.bfloat16, tm_cfg=512, vmem_limit_bytes=None):
    """Fused 3x3 conv (padding=1, stride 1|2) + bias (+LeakyReLU 0.2), NCHW in / NCHW out."""
    w_mat, bias, stride = layer["w"], layer["b"], layer["stride"]
    Cout, Cin_pad = layer["cout"], layer["cin_pad"]
    B, Cin, H, W = x.shape

    plan = _tap_plan(stride)
    if stride == 1:
        Ho, Wo = H, W
        OW = W + 2                                            # flat row width (2 garbage cols/row)
        offs = tuple((p, ky * OW + kx) for (p, ky, kx) in plan)
        P = 1
    else:
        Ho, Wo = (H + 1) // 2, (W + 1) // 2
        OW = Wo + 1
        offs = tuple((p, (ky // 2) * OW + (kx // 2)) for (p, ky, kx) in plan)
        P = 4

    M_used = Ho * OW
    max_d = max(d for _, d in offs)
    HALO = _ceil_to(max_d, 128)                               # narrow halo block width
    TM = min(_ceil_to(tm_cfg, 128), _ceil_to(M_used, 128))
    TM = _ceil_to(max(TM, HALO), HALO)                        # TM multiple of HALO (and of 128)
    nM = -(-M_used // TM)
    Mp = nM * TM + HALO                                       # minimum flat length we address
    hstep = TM // HALO

    # Single combined pad (channel pad + conv zero-pad + flat-length pad); stride-2 phases are
    # pure strided views of this one padded tensor (no per-phase pad pass).
    if stride == 1:
        Hq = max(H + 2, -(-Mp // OW))
        xp = jnp.pad(x, ((0, 0), (0, Cin_pad - Cin), (1, Hq - H - 1), (1, 1)))
        slab = xp.reshape(B, 1, Cin_pad, Hq * OW)
    else:
        Hq = max(Ho + 1, -(-Mp // OW))
        rows, cols = 2 * Hq, 2 * OW
        xp = jnp.pad(x, ((0, 0), (0, Cin_pad - Cin), (1, rows - H - 1), (1, cols - W - 1)))
        phs = [xp[:, :, py::2, px::2] for py in (0, 1) for px in (0, 1)]
        slab = jnp.stack(phs, axis=1).reshape(B, 4, Cin_pad, Hq * OW)

    kernel = functools.partial(_conv_kernel, offsets=offs, lrelu=lrelu)
    cparams = dict(dimension_semantics=("parallel", "parallel"))
    if vmem_limit_bytes is not None:
        cparams["vmem_limit_bytes"] = vmem_limit_bytes
    y_flat = pl.pallas_call(
        kernel,
        out_shape=jax.ShapeDtypeStruct((B, Cout, nM * TM), out_dtype),
        grid=(B, nM),
        in_specs=[
            pl.BlockSpec((1, P, Cin_pad, TM), lambda b, m: (b, 0, 0, m)),              # main block
            pl.BlockSpec((1, P, Cin_pad, HALO), lambda b, m: (b, 0, 0, (m + 1) * hstep)),  # halo
            pl.BlockSpec((Cout, 9 * Cin_pad), lambda b, m: (0, 0)),                    # weights
            pl.BlockSpec((Cout, 1), lambda b, m: (0, 0)),                              # bias
        ],
        out_specs=pl.BlockSpec((1, Cout, TM), lambda b, m: (b, 0, m)),
        compiler_params=pltpu.CompilerParams(**cparams),
    )(slab, slab, w_mat, bias)

    # drop flat padding and per-row garbage columns -> NCHW directly (no transposes)
    y = y_flat[:, :, :M_used].reshape(B, Cout, Ho, OW)[:, :, :, :Wo]
    return y


# ---------------------------------------------------------------------------
# Model (parameters + forward)
# ---------------------------------------------------------------------------
def make_disc_params(rng, in_ch, hid):
    # (Cin, Cout, stride, spectral_norm?) -- last layer has no SN and no LeakyReLU
    cfg = [
        (in_ch, hid, 1, True),
        (hid, hid * 2, 2, True),
        (hid * 2, hid * 4, 1, True),
        (hid * 4, hid * 8, 2, True),
        (hid * 8, hid * 16, 1, True),
        (hid * 16, hid * 32, 2, True),
        (hid * 32, 1, 1, False),
    ]
    params = []
    for cin, cout, stride, sn in cfg:
        w = rng.standard_normal((3, 3, cin, cout)).astype(np.float32) / np.sqrt(9 * cin)
        bias = 0.01 * rng.standard_normal((cout,)).astype(np.float32)
        if sn:
            # TODO(synk): PyTorch spectral_norm runs a per-forward power iteration; here we
            # normalize once at init with the exact spectral norm of the synthetic weight.
            w2d = w.transpose(3, 2, 0, 1).reshape(cout, -1)   # torch (Cout, Cin*3*3)
            sigma = np.linalg.norm(w2d, ord=2)
            w = w / sigma
        cin_pad = _ceil_to(cin, 16)                           # bf16 sublane-friendly padding
        plan = _tap_plan(stride)
        w_mat = np.zeros((cout, 9 * cin_pad), np.float32)     # one fat-K matmul weight
        for j, (p, ky, kx) in enumerate(plan):
            w_mat[:, j * cin_pad: j * cin_pad + cin] = w[ky, kx].T
        params.append(dict(
            w=jnp.asarray(w_mat, dtype=jnp.bfloat16),
            b=jnp.asarray(bias.reshape(cout, 1)),             # f32 bias
            stride=stride, cin=cin, cin_pad=cin_pad, cout=cout,
        ))
    return params


def freq_disc_forward(x_nchw, params, tm_cfg=512, vmem_limit_bytes=None):
    # Chain runs in bf16 with f32 MXU accumulation; the final (Cout=1) output is f32 straight
    # from the kernel accumulator.
    # TODO(synk): feature maps are returned bf16 (torch returns f32); cast outside if required.
    # TODO(synk): at these tiny shapes the remaining win is fusing the whole 7-layer chain into
    # one pallas_call with VMEM-resident activations; kept per-layer calls for robustness.
    x = x_nchw.astype(jnp.bfloat16)
    feats = []
    n = len(params)
    for li, layer in enumerate(params):
        last = li == n - 1
        x = conv3x3_nchw(x, layer, lrelu=not last,
                         out_dtype=jnp.float32 if last else jnp.bfloat16,
                         tm_cfg=tm_cfg, vmem_limit_bytes=vmem_limit_bytes)
        feats.append(x)
    return feats[-1], feats[:-1]


def multi_freq_disc_forward(est, all_params, windows, sample_rate=44100,
                            tm_cfg=512, vmem_limit_bytes=None):
    B, nch, T = est.shape
    est = normalize_est(est)                    # est / sqrt(sum(est^2) + eps) per batch
    est_flat = est.reshape(B * nch, T)
    est_outputs, est_feature_maps = [], []
    for win, params in zip(windows, all_params):
        real, imag = stft_pallas(est_flat, win, win // 2)
        F_, nfr = real.shape[1], real.shape[2]
        ri = jnp.stack([real, imag], axis=1)    # (B*nch, 2, F, frames)
        ri = ri.reshape(B, nch * 2, F_, nfr)    # same as torch .view
        valid_enc = int(F_ * sample_rate / 44100)
        ri = ri[:, :, :valid_enc]
        out, fmap = freq_disc_forward(ri, params, tm_cfg=tm_cfg,
                                      vmem_limit_bytes=vmem_limit_bytes)
        est_outputs.append(out)
        est_feature_maps.append(fmap)
    return est_outputs, est_feature_maps


if __name__ == "__main__":
    B, nch, T = 2, 1, 256
    windows = [64, 128]
    hidden_channels = 8  # matches MultiFrequencyDiscriminator.__init__

    est = jax.random.normal(jax.random.PRNGKey(0), (B, nch, T), dtype=jnp.float32)

    rng = np.random.default_rng(0)
    all_params = [make_disc_params(rng, 2 * nch, hidden_channels) for _ in windows]

    outs, fmaps = multi_freq_disc_forward(est, all_params, windows)
    jax.block_until_ready(outs)
    jax.block_until_ready(fmaps)
    print("KERNEL_OK")
</pallas_src>

<mosaic_0001>
module attributes {stable_mosaic.version = 11 : i64} {
  func.func @_norm_kernel(%arg0: i32, %arg1: memref<1x1x256xf32, #tpu.memory_space<vmem>>, %arg2: memref<1x1x256xf32, #tpu.memory_space<vmem>>) attributes {dimension_semantics = [#tpu.dimension_semantics<parallel>], iteration_bounds = array<i64: 2>, scalar_prefetch = 0 : i64, scratch_operands = 0 : i64, tpu.core_type = #tpu.core_type<tc>, window_params = [{transform_indices = @transform_0, window_bounds = array<i64: 1, 1, 256>}, {transform_indices = @transform_1, window_bounds = array<i64: 1, 1, 256>}]} {
    %c0 = arith.constant 0 : index
    %c0_0 = arith.constant 0 : index
    %c0_1 = arith.constant 0 : index
    %0 = vector.load %arg1[%c0, %c0_0, %c0_1] : memref<1x1x256xf32, #tpu.memory_space<vmem>>, vector<1x1x256xf32>
    %1 = arith.mulf %0, %0 : vector<1x1x256xf32>
    %2 = vector.shape_cast %1 : vector<1x1x256xf32> to vector<1x1x1x256xf32>
    %cst = arith.constant dense<0.000000e+00> : vector<1xf32>
    %3 = vector.multi_reduction <add>, %2, %cst [1, 2, 3] : vector<1x1x1x256xf32> to vector<1xf32>
    %4 = vector.shape_cast %3 : vector<1xf32> to vector<1x1x1x1xf32>
    %5 = vector.extract %4[0, 0, 0, 0] : f32 from vector<1x1x1x1xf32>
    %cst_2 = arith.constant 1.1920929E-7 : f32
    %6 = arith.addf %5, %cst_2 : f32
    %7 = math.rsqrt %6 : f32
    %8 = vector.broadcast %7 : f32 to vector<1x1x256xf32>
    %9 = arith.mulf %0, %8 : vector<1x1x256xf32>
    %c0_3 = arith.constant 0 : index
    %c0_4 = arith.constant 0 : index
    %c0_5 = arith.constant 0 : index
    %10 = vector.load %arg2[%c0_3, %c0_4, %c0_5] : memref<1x1x256xf32, #tpu.memory_space<vmem>>, vector<1x1x256xf32>
    tpu.vector_store %arg2[%c0_3, %c0_4, %c0_5], %9 {strides = array<i32>} : memref<1x1x256xf32, #tpu.memory_space<vmem>>, vector<1x1x256xf32>,
    return
  }
  func.func @transform_0(%arg0: i32) -> (i32, i32, i32) {
    %c0_i32 = arith.constant 0 : i32
    %c0_i32_0 = arith.constant 0 : i32
    %c0_i32_1 = arith.constant 0 : i32
    return %arg0, %c0_i32, %c0_i32_0 : i32, i32, i32
  }
  func.func @transform_1(%arg0: i32) -> (i32, i32, i32) {
    %c0_i32 = arith.constant 0 : i32
    %c0_i32_0 = arith.constant 0 : i32
    %c0_i32_1 = arith.constant 0 : i32
    return %arg0, %c0_i32, %c0_i32_0 : i32, i32, i32
  }
}

</mosaic_0001>

<llo_original>
// kernel: tpu_custom_call.1
$region0: #{tpu_custom_call.1}
  #allocation0 [shape = 'u32[]', space=smem, size = 0x4, offset = 0x4, fixed_abs, tag = 'smem constant byte address 0x4 - core index']
  #allocation1 [shape = 'u32[144,128]{1,0:T(1,128)}', space=vmem, size = 0x12000, scoped, tag = 'internal scratch']
  %s0 = inlined_call_operand.hbm [shape: f32[2,1,256], index: 0, kind: input, shape index: {}]
  %s1 = inlined_call_operand.hbm [shape: f32[2,1,256], index: 1, kind: output, shape index: {}]
  %s2 = sld [smem:[#allocation0]]
  $region41: #{tpu_custom_call.1} parent=0
    _
  %s4 = ssub.s32 1, %s2
  %s5 = scalar_select 0, %s4, %s2
  $region1: #{tpu_custom_call.1} parent=0
    #allocation2 [shape = 'u8[2048]{0}', space=vmem, size = 0x800, scoped, tag = 'input window, operand 0']
    #allocation3 [shape = 's32[2]{0}', space=sflag, size = 0x8, scoped, tag = 'scoped memory for tpu_custom_call.1']
    #allocation4 [shape = 's32[2]{0}', space=sflag, size = 0x8, scoped, tag = 'scoped memory for tpu_custom_call.1']
    #allocation5 [shape = 'u8[2048]{0}', space=vmem, size = 0x800, scoped, tag = 'output window, operand 0']
    %6 = vsyncpa [#allocation3], 0
    %s7 = scalar_lea.sflag [#allocation3], 1
    %8 = vsyncpa %s7, 0
    %9 = vsyncpa [#allocation4], 0
    %s10 = scalar_lea.sflag [#allocation4], 1
    %11 = vsyncpa %s10, 0
    loop: start=0, step=1, limit=4
    $region2: #{tpu_custom_call.1} parent=1 // loop_pre_header
      _
    $region3: #{tpu_custom_call.1} parent=1 // loop_header
      %s13 = sphi 0, %s17
      %p14 = scmp.ge.s32.totalorder %s13, 4
      %s23 = sphi 0, %s25
      %s26 = sphi 0, %s23
      %s27 = sphi 0, %s26
      %s43 = sphi 0, %s27
      %s49 = sphi 0, %s51
      %s52 = sphi 0, %s49
      %s53 = sphi 0, %s52
      %s69 = sphi 0, %s53
    $region4: #{tpu_custom_call.1} parent=1 // loop_header_branch
      %16 = sbr.rel (%p14) target = $region8
    $region5: #{tpu_custom_call.1} parent=1 // loop_body
      %s18 = ssub.s32 %s13, 1
      %s19 = ssub.s32 %s13, 2
      %s20 = sadd.s32 %s13, 1
      %s21 = ssub.s32 %s13, %s20
      %p22 = scmp.eq.s32.totalorder %s21, 0
      %s24 = sadd.s32 %s23, 1
      %s25 = scalar_select %p22, %s23, %s24
      %p28 = pneg %p22
      %p29 = scmp.eq.s32.totalorder %s13, 1
      %p30 = por %p28, %p29
      %p31 = scmp.ne.s32.totalorder %s23, %s26
      %p32 = scmp.eq.s32.totalorder %s13, 0
      %p33 = por %p31, %p32
      %p34 = scmp.ne.s32.totalorder %s23, %s26
      %p35 = scmp.eq.s32.totalorder %s18, 1
      %p36 = por %p34, %p35
      %p37 = scmp.ne.s32.totalorder %s26, %s27
      %p38 = scmp.eq.s32.totalorder %s18, 0
      %p39 = por %p37, %p38
      %p40 = scmp.ne.s32.totalorder %s26, %s27
      %p41 = scmp.eq.s32.totalorder %s19, 1
      %p42 = por %p40, %p41
      %p44 = scmp.ne.s32.totalorder %s27, %s43
      %p45 = scmp.eq.s32.totalorder %s19, 0
      %p46 = por %p44, %p45
      %s47 = ssub.s32 %s13, %s20
      %p48 = scmp.eq.s32.totalorder %s47, 0
      %s50 = sadd.s32 %s49, 1
      %s51 = scalar_select %p48, %s49, %s50
      %p54 = pneg %p48
      %p55 = scmp.eq.s32.totalorder %s13, 1
      %p56 = por %p54, %p55
      %p57 = scmp.ne.s32.totalorder %s49, %s52
      %p58 = scmp.eq.s32.totalorder %s13, 0
      %p59 = por %p57, %p58
      %p60 = scmp.ne.s32.totalorder %s49, %s52
      %p61 = scmp.eq.s32.totalorder %s18, 1
      %p62 = por %p60, %p61
      %p63 = scmp.ne.s32.totalorder %s52, %s53
      %p64 = scmp.eq.s32.totalorder %s18, 0
      %p65 = por %p63, %p64
      %p66 = scmp.ne.s32.totalorder %s52, %s53
      %p67 = scmp.eq.s32.totalorder %s19, 1
      %p68 = por %p66, %p67
      %p70 = scmp.ne.s32.totalorder %s53, %s69
      %p71 = scmp.eq.s32.totalorder %s19, 0
      %p72 = por %p70, %p71
      %p73 = scmp.le.s32.totalorder 1, %s13
      %p74 = scmp.lt.s32.totalorder %s13, 3
      %p75 = pnand %p73, %p74
      %p76 = pneg %p75
      // Predicated region
      $region9: #{tpu_custom_call.1} parent=5 // pred_check
        _
      $region10: #{tpu_custom_call.1} parent=5 // pred_check_branch
        %78 = sbr.rel (%p75) target = $region12
      $region11: #{tpu_custom_call.1} parent=5 // pred_region
        %s79 = ssub.s32 %s13, 1
      $region12: #{tpu_custom_call.1} parent=5 // pred_fallthru
        _
      %p80 = scmp.lt.s32.totalorder %s13, 2
      // Predicated region
      $region13: #{tpu_custom_call.1} parent=5 // pred_check
        %p81 = pneg %p80
      $region14: #{tpu_custom_call.1} parent=5 // pred_check_branch
        %83 = sbr.rel (%p81) target = $region16
      $region15: #{tpu_custom_call.1} parent=5 // pred_region
        // Predicated region
        $region17: #{tpu_custom_call.1} parent=15 // pred_check
          %p84 = pneg %p33
        $region18: #{tpu_custom_call.1} parent=15 // pred_check_branch
          %86 = sbr.rel (%p84) target = $region20
        $region19: #{tpu_custom_call.1} parent=15 // pred_region
          %s87 = sand.u32 %s23, 1
          %s88 = scalar_lea.sflag [#allocation3], %s87
          %s89 = sand.u32 %s23, 1
          %s90 = smul.addr %s89, 2
          %s91 = scalar_lea.vmem [#allocation2], %s90
          %s93 = ssub.s32 32, 32
          %94 = vsyncadd %s88, %s93
          %s95 = smul.addr %s13, 2
          %s96 = smul.addr %s95, 16
          %s97 = scalar_lea.hbm %s0, %s96
          %s99 = sshll.u32 %s91, 4
          %s100 = int_to_ptr.vmem [resolvable:$true] %s99
          %102 = dma.hbm_to_vmem [thread:$0]  %s97, 32, %s100, %s88
        $region20: #{tpu_custom_call.1} parent=15 // pred_fallthru
          _
      $region16: #{tpu_custom_call.1} parent=5 // pred_fallthru
        _
      %p103 = scmp.le.s32.totalorder 1, %s13
      %p104 = scmp.lt.s32.totalorder %s13, 3
      %p105 = pnand %p103, %p104
      %p106 = pneg %p105
      // Predicated region
      $region21: #{tpu_custom_call.1} parent=5 // pred_check
        _
      $region22: #{tpu_custom_call.1} parent=5 // pred_check_branch
        %108 = sbr.rel (%p105) target = $region24
      $region23: #{tpu_custom_call.1} parent=5 // pred_region
        %s109 = ssub.s32 %s13, 1
        %s110 = sand.u32 %s26, 1
        %s111 = scalar_lea.sflag [#allocation3], %s110
        %s112 = sand.u32 %s26, 1
        %s113 = smul.addr %s112, 2
        %s114 = scalar_lea.vmem [#allocation2], %s113
        // Predicated region
        $region25: #{tpu_custom_call.1} parent=23 // pred_check
          %p115 = pneg %p39
        $region26: #{tpu_custom_call.1} parent=23 // pred_check_branch
          %117 = sbr.rel (%p115) target = $region28
        $region27: #{tpu_custom_call.1} parent=23 // pred_region
          %118 = dma.done %s111, 32
        $region28: #{tpu_custom_call.1} parent=23 // pred_fallthru
          _
        %s119 = sand.u32 %s26, 1
        %s120 = scalar_lea.sflag [#allocation3], %s119
        %s121 = sand.u32 %s26, 1
        %s122 = smul.addr %s121, 2
        %s123 = scalar_lea.vmem [#allocation2], %s122
        %p124 = pneg %p39
        %p125 = pneg %p36
        %p126 = pneg %p65
        %p127 = pneg %p62
        %s128 = sand.u32 %s52, 1
        %s129 = scalar_lea.sflag [#allocation4], %s128
        %s130 = sand.u32 %s52, 1
        %s131 = smul.addr %s130, 2
        %s132 = scalar_lea.vmem [#allocation5], %s131
        %v133 = vld [vmem:[%s114] sm:$0x3]
        %v134 = vmul.f32 %v133, %v133
        %v136 = vlaneseq
        %v137 = vshrl.u32 %v136, 7
        %v138 = vsub.s32 0, %v137
        %v139 = vrot.slane %v134, %v138
        %v140 = vlaneseq
        %v141 = vshrl.u32 %v140, 7
        %v142 = vsub.s32 1, %v141
        %v143 = vrot.slane %v134, %v142
        %vm146 = vcmask 1040384
        %v147 = vsel %vm146, %v139, 0.0
        %v148 = vsel %vm146, %v143, 0.0
        %v149 = vadd.f32 %v147, %v148
        %150 = vadd.xlane.f32.xlu0 %v149
        %v151 = vpop.xlane.xlu0 %150
        %v152 = vrot.slane %v151, 4
        %v153 = vadd.f32 %v151, %v152
        %v154 = vrot.slane %v153, 2
        %v155 = vadd.f32 %v153, %v154
        %v156 = vrot.slane %v155, 1
        %v157 = vadd.f32 %v155, %v156
        %s158 = vtos %v157
        %s159 = sadd.f32 %s158, 1.1920929e-07
        %v160 = vstv %s159
        %v161 = vrsqrt.pop %v160
        %s162 = vtos %v161
        %v163 = vstv %s162
        %v164 = vmul.f32 %v133, %v163
        %v165 = vlaneseq
        %vm166 = vcmp.ge.s32.totalorder %v165, 0
        %vm167 = vcmp.lt.s32.totalorder %v165, 256
        %vm168 = vmand %vm166, %vm167
        %169 = vst.msk [vmem:[%s132] sm:$0x3] %vm168, %v164
        %s170 = sand.u32 %s52, 1
        %s171 = scalar_lea.sflag [#allocation4], %s170
        %s172 = sand.u32 %s52, 1
        %s173 = smul.addr %s172, 2
        %s174 = scalar_lea.vmem [#allocation5], %s173
        // Predicated region
        $region29: #{tpu_custom_call.1} parent=23 // pred_check
          %p175 = pneg %p62
        $region30: #{tpu_custom_call.1} parent=23 // pred_check_branch
          %177 = sbr.rel (%p175) target = $region32
        $region31: #{tpu_custom_call.1} parent=23 // pred_region
          %s179 = ssub.s32 32, 32
          %180 = vsyncadd %s171, %s179
          %s181 = smul.addr %s18, 2
          %s182 = smul.addr %s181, 16
          %s183 = scalar_lea.hbm %s1, %s182
          %s185 = sshll.u32 %s174, 4
          %s186 = int_to_ptr.vmem [resolvable:$true] %s185
          %188 = dma.vmem_to_hbm [thread:$0]  %s186, 32, %s183, %s171
        $region32: #{tpu_custom_call.1} parent=23 // pred_fallthru
          _
      $region24: #{tpu_custom_call.1} parent=5 // pred_fallthru
        _
      %p189 = scmp.le.s32.totalorder 2, %s13
      // Predicated region
      $region33: #{tpu_custom_call.1} parent=5 // pred_check
        %p190 = pneg %p189
      $region34: #{tpu_custom_call.1} parent=5 // pred_check_branch
        %192 = sbr.rel (%p190) target = $region36
      $region35: #{tpu_custom_call.1} parent=5 // pred_region
        %s193 = ssub.s32 %s13, 2
        // Predicated region
        $region37: #{tpu_custom_call.1} parent=35 // pred_check
          %p194 = pneg %p68
        $region38: #{tpu_custom_call.1} parent=35 // pred_check_branch
          %196 = sbr.rel (%p194) target = $region40
        $region39: #{tpu_custom_call.1} parent=35 // pred_region
          %s197 = sand.u32 %s53, 1
          %s198 = scalar_lea.sflag [#allocation4], %s197
          %s199 = sand.u32 %s53, 1
          %s200 = smul.addr %s199, 2
          %s201 = scalar_lea.vmem [#allocation5], %s200
          %202 = dma.done %s198, 32
        $region40: #{tpu_custom_call.1} parent=35 // pred_fallthru
          _
      $region36: #{tpu_custom_call.1} parent=5 // pred_fallthru
        _
    $region6: #{tpu_custom_call.1} parent=1 // loop_footer
      %s17 = sadd.s32 1, %s13
    $region7: #{tpu_custom_call.1} parent=1 // loop_footer_branch
      %12 = sbr.rel target = $region3
    $region8: #{tpu_custom_call.1} parent=1 // loop_exit
      _
    %203 = vsyncpa [#allocation3], 1
    %s204 = scalar_lea.sflag [#allocation3], 1
    %205 = vsyncpa %s204, 1
    %206 = vsyncpa [#allocation4], 1
    %s207 = scalar_lea.sflag [#allocation4], 1
    %208 = vsyncpa %s207, 1

</llo_original>
